<compile_context>
chip_gen: v6e
topology: v6e:2x2x1
jax: 0.10.0
libtpu: 0.0.40
codegen_flags: <defaults>
</compile_context>

<pallas_src>
import functools
import math

import jax
import jax.numpy as jnp
from jax.experimental import pallas as pl
from jax.experimental.pallas import tpu as pltpu


def _scaling_kernel(ab_ref, x_ref, o_ref):
    # ab_ref: (br, 2) f32 -> column 0 = per-row multiplier a, column 1 = offset b.
    # x_ref, o_ref: (br, bl) data tiles.
    ab = ab_ref[...]
    a = ab[:, 0:1]
    b = ab[:, 1:2]
    x = x_ref[...].astype(jnp.float32)
    o_ref[...] = (x * a + b).astype(o_ref.dtype)


def _choose_row_split(R, L):
    """Smallest k dividing L with (R*k) % 8 == 0 and (L // k) % 128 == 0.

    Returns 1 when no such k exists (or when the layout is already aligned).
    """
    if R % 8 == 0 and L % 128 == 0:
        return 1
    step = 8 // math.gcd(R, 8)  # k must be a multiple of this
    limit = min(L // 128, 64)
    for k in range(step, limit + 1, step):
        if L % k == 0 and (L // k) % 128 == 0:
            return k
    return 1


def _select_tiles(R, L, itemsize, budget):
    """Pick (br, bl) block shape. Prefers full, contiguous rows."""
    row_cands = [d for d in range(8, R + 1, 8) if R % d == 0]      # multiples of 8
    lane_cands = [d for d in range(128, L + 1, 128) if L % d == 0]  # multiples of 128
    row_bytes = L * itemsize

    if row_cands and row_cands[0] * row_bytes <= budget:
        # Full-row blocks: each block is one contiguous HBM range.
        bl = L
        fitting = [d for d in row_cands if d * row_bytes <= budget]
        multi = [d for d in fitting if R // d >= 2]   # keep >=2 grid steps if possible
        br = (multi or fitting)[-1]
    else:
        # Either a single 8-row band already blows the budget, or R has no
        # multiple-of-8 divisor (unsplittable remainder): split the lane axis.
        br = row_cands[0] if row_cands else R
        max_bl = max(128, budget // max(br * itemsize, 1))
        fitting = [d for d in lane_cands if d <= max_bl]
        if fitting:
            multi = [d for d in fitting if L // d >= 2]
            bl = (multi or fitting)[-1]
        else:
            bl = L  # ragged last dim (e.g. 7x7 maps): full-dim block, masked stores.

    # Ensure at least 2 grid steps when cheaply possible (v7x has 2 TensorCores
    # and a 1-step grid also gets no DMA/compute overlap).
    if R // br == 1 and L // bl == 1:
        lane_multi = [d for d in lane_cands
                      if L // d >= 2 and br * d * itemsize <= budget]
        if lane_multi:
            bl = lane_multi[-1]

    return br, bl


@functools.partial(jax.jit, static_argnames=("target_block_bytes",))
def scaling_layer(x, shift, scale, *, target_block_bytes=4 << 20):
    """Applies (x - shift) / scale with per-channel shift/scale.

    Args:
      x: [N, C, H, W] input (f32 or bf16), NCHW layout.
      shift: per-channel shift, shape (C,) (or any shape reshapeable to (C,)).
      scale: per-channel scale, same shape rules as shift.
      target_block_bytes: approximate per-block VMEM footprint for one operand.
    Returns:
      Array with the same shape/dtype as x.
    """
    N, C, H, W = x.shape
    R, L = N * C, H * W
    shift = jnp.reshape(shift, (-1,)).astype(jnp.float32)
    scale = jnp.reshape(scale, (-1,)).astype(jnp.float32)

    # Fold the divide into a multiply-add: out = x * (1/scale) + (-shift/scale).
    a = 1.0 / scale
    b = -shift / scale

    # Row-split factor to fill sublanes/lanes when N*C < 8 (small-batch LPIPS).
    k = _choose_row_split(R, L)
    R2, L2 = R * k, L // k

    # Lane-dense 2D view (free reshape for contiguous NCHW).
    x2 = x.reshape(R2, L2)

    # Per-(repacked)-row multiplier/offset, packed into one (R2, 2) f32 array.
    a_rows = jnp.repeat(jnp.tile(a, (N,)), k)
    b_rows = jnp.repeat(jnp.tile(b, (N,)), k)
    ab_rows = jnp.stack([a_rows, b_rows], axis=1)  # (R2, 2) f32

    itemsize = jnp.dtype(x.dtype).itemsize
    br, bl = _select_tiles(R2, L2, itemsize, target_block_bytes)
    grid = (R2 // br, L2 // bl)

    out2 = pl.pallas_call(
        _scaling_kernel,
        out_shape=jax.ShapeDtypeStruct((R2, L2), x.dtype),
        grid=grid,
        in_specs=[
            pl.BlockSpec((br, 2), lambda i, j: (i, 0)),   # packed a/b per row-tile
            pl.BlockSpec((br, bl), lambda i, j: (i, j)),  # x tile
        ],
        out_specs=pl.BlockSpec((br, bl), lambda i, j: (i, j)),
        compiler_params=pltpu.CompilerParams(
            dimension_semantics=("parallel", "parallel"),
            vmem_limit_bytes=32 * 1024 * 1024,
        ),
    )(ab_rows, x2)

    return out2.reshape(N, C, H, W)


def _reference(x, shift, scale):
    return (x - shift[None, :, None, None]) / scale[None, :, None, None]


if __name__ == "__main__":
    # Deterministic buffers exactly as in ScalingLayer.__init__ (C = 3, RGB).
    shift = jnp.array([-0.030, -0.088, -0.188], dtype=jnp.float32)
    scale = jnp.array([0.458, 0.448, 0.450], dtype=jnp.float32)

    key = jax.random.PRNGKey(0)
    k1, k2, k3, k4 = jax.random.split(key, 4)

    # 1) R=6, L=512 -> repacked by k=4 to (24, 128): full-row blocks, 3 grid steps.
    x1 = jax.random.normal(k1, (2, 3, 16, 32), dtype=jnp.float32)
    out1 = jax.block_until_ready(scaling_layer(x1, shift, scale))
    assert out1.shape == x1.shape
    assert jnp.allclose(out1, _reference(x1, shift, scale), atol=1e-5, rtol=1e-5)

    # 2) N=1: R=3, L=1024 -> repacked by k=8 to (24, 128).
    x2 = jax.random.normal(k2, (1, 3, 32, 32), dtype=jnp.float32)
    out2 = jax.block_until_ready(scaling_layer(x2, shift, scale))
    assert jnp.allclose(out2, _reference(x2, shift, scale), atol=1e-5, rtol=1e-5)

    # 3) R=6, L=256: no repack factor exists -> fallback path, lane-split grid.
    x3 = jax.random.normal(k3, (2, 3, 16, 16), dtype=jnp.float32)
    out3 = jax.block_until_ready(scaling_layer(x3, shift, scale))
    assert jnp.allclose(out3, _reference(x3, shift, scale), atol=1e-5, rtol=1e-5)

    # 4) Ragged 7x7 spatial dims (L=49): full-dim block, masked-store path.
    x4 = jax.random.normal(k4, (2, 3, 7, 7), dtype=jnp.float32)
    out4 = jax.block_until_ready(scaling_layer(x4, shift, scale))
    assert jnp.allclose(out4, _reference(x4, shift, scale), atol=1e-5, rtol=1e-5)

    print("KERNEL_OK")
</pallas_src>

<mosaic_0001>
module attributes {stable_mosaic.version = 11 : i64} {
  func.func @_scaling_kernel(%arg0: i32, %arg1: i32, %arg2: memref<8x2xf32, #tpu.memory_space<vmem>>, %arg3: memref<8x128xf32, #tpu.memory_space<vmem>>, %arg4: memref<8x128xf32, #tpu.memory_space<vmem>>) attributes {dimension_semantics = [#tpu.dimension_semantics<parallel>, #tpu.dimension_semantics<parallel>], iteration_bounds = array<i64: 3, 1>, scalar_prefetch = 0 : i64, scratch_operands = 0 : i64, tpu.core_type = #tpu.core_type<tc>, window_params = [{transform_indices = @transform_0, window_bounds = array<i64: 8, 2>}, {transform_indices = @transform_1, window_bounds = array<i64: 8, 128>}, {transform_indices = @transform_2, window_bounds = array<i64: 8, 128>}]} {
    %c0 = arith.constant 0 : index
    %c0_0 = arith.constant 0 : index
    %0 = vector.load %arg2[%c0, %c0_0] : memref<8x2xf32, #tpu.memory_space<vmem>>, vector<8x2xf32>
    %1 = vector.extract_strided_slice %0 {offsets = [0, 0], sizes = [8, 1], strides = [1, 1]} : vector<8x2xf32> to vector<8x1xf32>
    %2 = vector.extract_strided_slice %0 {offsets = [0, 1], sizes = [8, 1], strides = [1, 1]} : vector<8x2xf32> to vector<8x1xf32>
    %c0_1 = arith.constant 0 : index
    %c0_2 = arith.constant 0 : index
    %3 = vector.load %arg3[%c0_1, %c0_2] : memref<8x128xf32, #tpu.memory_space<vmem>>, vector<8x128xf32>
    %4 = vector.broadcast %1 : vector<8x1xf32> to vector<8x128xf32>
    %5 = arith.mulf %3, %4 : vector<8x128xf32>
    %6 = vector.broadcast %2 : vector<8x1xf32> to vector<8x128xf32>
    %7 = arith.addf %5, %6 : vector<8x128xf32>
    %c0_3 = arith.constant 0 : index
    %c0_4 = arith.constant 0 : index
    %8 = vector.load %arg4[%c0_3, %c0_4] : memref<8x128xf32, #tpu.memory_space<vmem>>, vector<8x128xf32>
    tpu.vector_store %arg4[%c0_3, %c0_4], %7 {strides = array<i32>} : memref<8x128xf32, #tpu.memory_space<vmem>>, vector<8x128xf32>,
    return
  }
  func.func @transform_0(%arg0: i32, %arg1: i32) -> (i32, i32) {
    %c0_i32 = arith.constant 0 : i32
    %c0_i32_0 = arith.constant 0 : i32
    return %arg0, %c0_i32 : i32, i32
  }
  func.func @transform_1(%arg0: i32, %arg1: i32) -> (i32, i32) {
    %c0_i32 = arith.constant 0 : i32
    return %arg0, %arg1 : i32, i32
  }
  func.func @transform_2(%arg0: i32, %arg1: i32) -> (i32, i32) {
    %c0_i32 = arith.constant 0 : i32
    return %arg0, %arg1 : i32, i32
  }
}

</mosaic_0001>

<llo_original>
// kernel: tile.14
$region0: #{tile.14}
  %s0 = inlined_call_operand.vmem [shape: f32[2,3], index: 0, kind: input, shape index: {}]
  %s1 = inlined_call_operand.vmem [shape: f32[6], index: 1, kind: output, shape index: {}]
  $region1: #{tile.14} parent=0
    #allocation0 [shape = 'u8[4096]{0}', space=vmem, size = 0x1000, scoped, tag = 'scoped mem for output reshape']
    #allocation1 [shape = 'u8[4096]{0}', space=vmem, size = 0x1000, scoped, tag = 'scoped mem for input reshape']
    %s3 = sshll.u32 1, 2
    %s4 = ssub.s32 %s3, 1
    %v5 = vld [vmem:[%s0] sm:%s4]
    %6 = vst [vmem:[#allocation1] sm:%s4] %v5
    %v7 = vld [vmem:[#allocation1] sm:$0x1]
    %vm8 = vcmask 23552
    %9 = vst.msk [vmem:[#allocation0] sm:$0x1] %vm8, %v7
    %s10 = scalar_lea.vmem [#allocation1], 1
    %v11 = vld [vmem:[%s10] sm:$0x1]
    %12 = vrot.lane.b32.xlu0 %v11, 3
    %v13 = vpop.permute.xlu0 %12
    %vm14 = vcmask 48152
    %15 = vst.msk [vmem:[#allocation0] sm:$0x1] %vm14, %v13
    %s17 = sshll.u32 1, 1
    %s18 = ssub.s32 %s17, 1
    %v20 = vld [vmem:[#allocation0] sm:%s18]
    %s21 = sshll.u32 1, 1
    %s22 = ssub.s32 %s21, 1
    %23 = vst [vmem:[%s1] sm:%s22] %v20

// kernel: tile.13
$region0: #{tile.13}
  #allocation0 [shape = 's32[1]{0}', space=sflag, size = 0x4, scoped, tag = 'scoped memory for tile.13']
  %s0 = inlined_call_operand.vmem [shape: f32[3], index: 0, kind: input, shape index: {}]
  %s1 = inlined_call_operand.vmem [shape: f32[2,3], index: 1, kind: output, shape index: {}]
  // Predicated region
  $region2: #{tile.13} parent=0 // pred_check
    _
  $region3: #{tile.13} parent=0 // pred_check_branch
    %3 = sbr.rel (0) target = $region5
  $region4: #{tile.13} parent=0 // pred_region
    _
  $region5: #{tile.13} parent=0 // pred_fallthru
    _
  %v4 = vld [vmem:[%s0] ss:$0 sm:$0xff]
  %5 = vst [vmem:[%s1] sm:$0x3] %v4

// kernel: scaling_layer.1
$region0: #{scaling_layer.1}
  #allocation0 [shape = 'u32[]', space=smem, size = 0x4, offset = 0x4, fixed_abs, tag = 'smem constant byte address 0x4 - core index']
  #allocation1 [shape = 'u32[144,128]{1,0:T(1,128)}', space=vmem, size = 0x12000, scoped, tag = 'internal scratch']
  %s0 = inlined_call_operand.vmem [shape: f32[24,2], index: 0, kind: input, shape index: {}]
  %s1 = inlined_call_operand.vmem [shape: f32[24,128], index: 1, kind: input, shape index: {}]
  %s2 = inlined_call_operand.vmem [shape: f32[24,128], index: 2, kind: output, shape index: {}]
  %s3 = sld [smem:[#allocation0]]
  $region41: #{scaling_layer.1} parent=0
    _
  %s5 = ssub.s32 1, %s3
  %s6 = scalar_select 0, %s5, %s3
  loop: start=0, step=1, limit=5
  $region2: #{scaling_layer.1} parent=0 // loop_pre_header
    _
  $region3: #{scaling_layer.1} parent=0 // loop_header
    %s8 = sphi 0, %s12
    %p9 = scmp.ge.s32.totalorder %s8, 5
    %s15 = sphi 0, %s27
    %s16 = sphi 0, %s23
    %s17 = sphi 0, %s15
    %s18 = sphi 0, %s16
    %s19 = sphi 0, %s17
    %s20 = sphi 0, %s18
    %s30 = sphi 0, %s32
    %s33 = sphi 0, %s30
    %s34 = sphi 0, %s33
    %s50 = sphi 0, %s34
    %s58 = sphi 0, %s60
    %s61 = sphi 0, %s58
    %s62 = sphi 0, %s61
    %s78 = sphi 0, %s62
    %s86 = sphi 0, %s88
    %s89 = sphi 0, %s86
    %s90 = sphi 0, %s89
    %s106 = sphi 0, %s90
  $region4: #{scaling_layer.1} parent=0 // loop_header_branch
    %11 = sbr.rel (%p9) target = $region8
  $region5: #{scaling_layer.1} parent=0 // loop_body
    %s13 = ssub.s32 %s8, 1
    %s14 = ssub.s32 %s8, 2
    %s21 = sadd.s32 1, %s16
    %p22 = scmp.ge.s32.totalorder %s21, 1
    %s23 = scalar_select %p22, 0, %s21
    %s24 = sadd.s32 1, %s15
    %s25 = scalar_select %p22, %s24, %s15
    %p26 = scmp.ge.s32.totalorder %s25, 3
    %s27 = scalar_select %p26, 0, %s25
    %s28 = ssub.s32 %s15, %s27
    %p29 = scmp.eq.s32.totalorder %s28, 0
    %s31 = sadd.s32 %s30, 1
    %s32 = scalar_select %p29, %s30, %s31
    %p35 = pneg %p29
    %p36 = scmp.eq.s32.totalorder %s8, 2
    %p37 = por %p35, %p36
    %p38 = scmp.ne.s32.totalorder %s30, %s33
    %p39 = scmp.eq.s32.totalorder %s8, 0
    %p40 = por %p38, %p39
    %p41 = scmp.ne.s32.totalorder %s30, %s33
    %p42 = scmp.eq.s32.totalorder %s13, 2
    %p43 = por %p41, %p42
    %p44 = scmp.ne.s32.totalorder %s33, %s34
    %p45 = scmp.eq.s32.totalorder %s13, 0
    %p46 = por %p44, %p45
    %p47 = scmp.ne.s32.totalorder %s33, %s34
    %p48 = scmp.eq.s32.totalorder %s14, 2
    %p49 = por %p47, %p48
    %p51 = scmp.ne.s32.totalorder %s34, %s50
    %p52 = scmp.eq.s32.totalorder %s14, 0
    %p53 = por %p51, %p52
    %s54 = ssub.s32 %s15, %s27
    %s55 = ssub.s32 %s16, %s23
    %s56 = sor.u32 %s54, %s55
    %p57 = scmp.eq.s32.totalorder %s56, 0
    %s59 = sadd.s32 %s58, 1
    %s60 = scalar_select %p57, %s58, %s59
    %p63 = pneg %p57
    %p64 = scmp.eq.s32.totalorder %s8, 2
    %p65 = por %p63, %p64
    %p66 = scmp.ne.s32.totalorder %s58, %s61
    %p67 = scmp.eq.s32.totalorder %s8, 0
    %p68 = por %p66, %p67
    %p69 = scmp.ne.s32.totalorder %s58, %s61
    %p70 = scmp.eq.s32.totalorder %s13, 2
    %p71 = por %p69, %p70
    %p72 = scmp.ne.s32.totalorder %s61, %s62
    %p73 = scmp.eq.s32.totalorder %s13, 0
    %p74 = por %p72, %p73
    %p75 = scmp.ne.s32.totalorder %s61, %s62
    %p76 = scmp.eq.s32.totalorder %s14, 2
    %p77 = por %p75, %p76
    %p79 = scmp.ne.s32.totalorder %s62, %s78
    %p80 = scmp.eq.s32.totalorder %s14, 0
    %p81 = por %p79, %p80
    %s82 = ssub.s32 %s15, %s27
    %s83 = ssub.s32 %s16, %s23
    %s84 = sor.u32 %s82, %s83
    %p85 = scmp.eq.s32.totalorder %s84, 0
    %s87 = sadd.s32 %s86, 1
    %s88 = scalar_select %p85, %s86, %s87
    %p91 = pneg %p85
    %p92 = scmp.eq.s32.totalorder %s8, 2
    %p93 = por %p91, %p92
    %p94 = scmp.ne.s32.totalorder %s86, %s89
    %p95 = scmp.eq.s32.totalorder %s8, 0
    %p96 = por %p94, %p95
    %p97 = scmp.ne.s32.totalorder %s86, %s89
    %p98 = scmp.eq.s32.totalorder %s13, 2
    %p99 = por %p97, %p98
    %p100 = scmp.ne.s32.totalorder %s89, %s90
    %p101 = scmp.eq.s32.totalorder %s13, 0
    %p102 = por %p100, %p101
    %p103 = scmp.ne.s32.totalorder %s89, %s90
    %p104 = scmp.eq.s32.totalorder %s14, 2
    %p105 = por %p103, %p104
    %p107 = scmp.ne.s32.totalorder %s90, %s106
    %p108 = scmp.eq.s32.totalorder %s14, 0
    %p109 = por %p107, %p108
    %p110 = scmp.le.s32.totalorder 1, %s8
    %p111 = scmp.lt.s32.totalorder %s8, 4
    %p112 = pnand %p110, %p111
    %p113 = pneg %p112
    // Predicated region
    $region9: #{scaling_layer.1} parent=5 // pred_check
      _
    $region10: #{scaling_layer.1} parent=5 // pred_check_branch
      %115 = sbr.rel (%p112) target = $region12
    $region11: #{scaling_layer.1} parent=5 // pred_region
      %s116 = ssub.s32 %s8, 1
    $region12: #{scaling_layer.1} parent=5 // pred_fallthru
      _
    %p117 = scmp.lt.s32.totalorder %s8, 3
    // Predicated region
    $region13: #{scaling_layer.1} parent=5 // pred_check
      %p118 = pneg %p117
    $region14: #{scaling_layer.1} parent=5 // pred_check_branch
      %120 = sbr.rel (%p118) target = $region16
    $region15: #{scaling_layer.1} parent=5 // pred_region
      // Predicated region
      $region17: #{scaling_layer.1} parent=15 // pred_check
        %p121 = pneg %p40
      $region18: #{scaling_layer.1} parent=15 // pred_check_branch
        %123 = sbr.rel (%p121) target = $region20
      $region19: #{scaling_layer.1} parent=15 // pred_region
        %p124 = scmp.lt.s32.totalorder %s15, 2
        %s125 = scalar_select %p124, %s15, 2
        %s126 = smul.addr %s125, 8
        %s127 = scalar_lea.vmem %s0, %s126
      $region20: #{scaling_layer.1} parent=15 // pred_fallthru
        _
      // Predicated region
      $region21: #{scaling_layer.1} parent=15 // pred_check
        %p128 = pneg %p68
      $region22: #{scaling_layer.1} parent=15 // pred_check_branch
        %130 = sbr.rel (%p128) target = $region24
      $region23: #{scaling_layer.1} parent=15 // pred_region
        %p131 = scmp.lt.s32.totalorder %s15, 2
        %s132 = scalar_select %p131, %s15, 2
        %p133 = scmp.lt.s32.totalorder %s16, 0
        %s134 = scalar_select %p133, %s16, 0
        %s135 = sadd.s32 %s134, %s132
        %s136 = smul.addr %s135, 8
        %s137 = scalar_lea.vmem %s1, %s136
      $region24: #{scaling_layer.1} parent=15 // pred_fallthru
        _
    $region16: #{scaling_layer.1} parent=5 // pred_fallthru
      _
    %p138 = scmp.le.s32.totalorder 1, %s8
    %p139 = scmp.lt.s32.totalorder %s8, 4
    %p140 = pnand %p138, %p139
    %p141 = pneg %p140
    // Predicated region
    $region25: #{scaling_layer.1} parent=5 // pred_check
      _
    $region26: #{scaling_layer.1} parent=5 // pred_check_branch
      %143 = sbr.rel (%p140) target = $region28
    $region27: #{scaling_layer.1} parent=5 // pred_region
      %s144 = ssub.s32 %s8, 1
      %p145 = scmp.lt.s32.totalorder %s17, 2
      %s146 = scalar_select %p145, %s17, 2
      %s147 = smul.addr %s146, 8
      %s148 = scalar_lea.vmem %s0, %s147
      %p149 = pneg %p46
      %p150 = pneg %p43
      %p151 = scmp.lt.s32.totalorder %s17, 2
      %s152 = scalar_select %p151, %s17, 2
      %p153 = scmp.lt.s32.totalorder %s18, 0
      %s154 = scalar_select %p153, %s18, 0
      %s155 = sadd.s32 %s154, %s152
      %s156 = smul.addr %s155, 8
      %s157 = scalar_lea.vmem %s1, %s156
      %p158 = pneg %p74
      %p159 = pneg %p71
      %p160 = pneg %p102
      %p161 = pneg %p99
      %p162 = scmp.lt.s32.totalorder %s17, 2
      %s163 = scalar_select %p162, %s17, 2
      %p164 = scmp.lt.s32.totalorder %s18, 0
      %s165 = scalar_select %p164, %s18, 0
      %s166 = sadd.s32 %s165, %s163
      %s167 = smul.addr %s166, 8
      %s168 = scalar_lea.vmem %s2, %s167
      %p169 = scmp.lt.s32.totalorder %s17, 2
      %s170 = scalar_select %p169, %s17, 2
      %s171 = smul.addr %s170, 8
      %s172 = scalar_lea.vmem %s0, %s171
      %p173 = scmp.lt.s32.totalorder %s17, 2
      %s174 = scalar_select %p173, %s17, 2
      %p175 = scmp.lt.s32.totalorder %s18, 0
      %s176 = scalar_select %p175, %s18, 0
      %s177 = sadd.s32 %s176, %s174
      %s178 = smul.addr %s177, 8
      %s179 = scalar_lea.vmem %s1, %s178
      %p180 = scmp.lt.s32.totalorder %s17, 2
      %s181 = scalar_select %p180, %s17, 2
      %p182 = scmp.lt.s32.totalorder %s18, 0
      %s183 = scalar_select %p182, %s18, 0
      %s184 = sadd.s32 %s183, %s181
      %s185 = smul.addr %s184, 8
      %s186 = scalar_lea.vmem %s2, %s185
      %v187 = vld [vmem:[%s172] sm:$0xff]
      %v188 = vld [vmem:[%s179] sm:$0xff]
      %190 = vset.pattern.permute.xlu0 0
      %191 = vperm.xlu0 %190, %v187
      %v192 = vpop.permute.xlu0 %191
      %v194 = vmul.f32 %v188, %v192
      %195 = vset.pattern.permute.xlu0 1
      %196 = vperm.xlu0 %195, %v187
      %v197 = vpop.permute.xlu0 %196
      %v199 = vadd.f32 %v194, %v197
      %200 = vst [vmem:[%s186] sm:$0xff] %v199
      %p201 = scmp.lt.s32.totalorder %s17, 2
      %s202 = scalar_select %p201, %s17, 2
      %p203 = scmp.lt.s32.totalorder %s18, 0
      %s204 = scalar_select %p203, %s18, 0
      %s205 = sadd.s32 %s204, %s202
      %s206 = smul.addr %s205, 8
      %s207 = scalar_lea.vmem %s2, %s206
      // Predicated region
      $region29: #{scaling_layer.1} parent=27 // pred_check
        %p208 = pneg %p99
      $region30: #{scaling_layer.1} parent=27 // pred_check_branch
        %210 = sbr.rel (%p208) target = $region32
      $region31: #{scaling_layer.1} parent=27 // pred_region
        _
      $region32: #{scaling_layer.1} parent=27 // pred_fallthru
        _
    $region28: #{scaling_layer.1} parent=5 // pred_fallthru
      _
    %p211 = scmp.le.s32.totalorder 2, %s8
    // Predicated region
    $region33: #{scaling_layer.1} parent=5 // pred_check
      %p212 = pneg %p211
    $region34: #{scaling_layer.1} parent=5 // pred_check_branch
      %214 = sbr.rel (%p212) target = $region36
    $region35: #{scaling_layer.1} parent=5 // pred_region
      %s215 = ssub.s32 %s8, 2
      // Predicated region
      $region37: #{scaling_layer.1} parent=35 // pred_check
        %p216 = pneg %p105
      $region38: #{scaling_layer.1} parent=35 // pred_check_branch
        %218 = sbr.rel (%p216) target = $region40
      $region39: #{scaling_layer.1} parent=35 // pred_region
        %p219 = scmp.lt.s32.totalorder %s19, 2
        %s220 = scalar_select %p219, %s19, 2
        %p221 = scmp.lt.s32.totalorder %s20, 0
        %s222 = scalar_select %p221, %s20, 0
        %s223 = sadd.s32 %s222, %s220
        %s224 = smul.addr %s223, 8
        %s225 = scalar_lea.vmem %s2, %s224
      $region40: #{scaling_layer.1} parent=35 // pred_fallthru
        _
    $region36: #{scaling_layer.1} parent=5 // pred_fallthru
      _
  $region6: #{scaling_layer.1} parent=0 // loop_footer
    %s12 = sadd.s32 1, %s8
  $region7: #{scaling_layer.1} parent=0 // loop_footer_branch
    %7 = sbr.rel target = $region3
  $region8: #{scaling_layer.1} parent=0 // loop_exit
    _

</llo_original>
